<compile_context>
chip_gen: v5e
topology: v5e:2x2
jax: 0.10.0
libtpu: 0.0.40
codegen_flags: <defaults>
</compile_context>

<pallas_src>
import functools

import jax
import jax.numpy as jnp
from jax.experimental import pallas as pl
from jax.experimental.pallas import tpu as pltpu


_INV_SQRT2 = 0.7071067811865476


def _round_up(x, m):
    return ((x + m - 1) // m) * m


def _cdiv(a, b):
    return (a + b - 1) // b


def _mlp_proj_ln_kernel(x_ref, w1_ref, b1_ref, w2_ref, b2_ref, g_ref, beta_ref,
                        o_ref, *, eps, c_real):
    # x_ref: (tm, E) row tile in the matmul compute dtype (bf16 by default).
    # Matmuls run on the MXU in the operand dtype with f32 accumulation; all
    # bias / GELU / LayerNorm math stays in f32.
    x = x_ref[...]

    # Linear 1: (tm, E) @ (E, H) -> f32
    h = jnp.dot(x, w1_ref[...], preferred_element_type=jnp.float32)
    h = h + b1_ref[...].astype(jnp.float32)

    # Exact GELU (PyTorch nn.GELU default): 0.5 * x * (1 + erf(x / sqrt(2))).
    h = 0.5 * h * (1.0 + jax.lax.erf(h * jnp.float32(_INV_SQRT2)))

    # Linear 2: (tm, H) @ (H, C_pad) -> f32
    y = jnp.dot(h.astype(w2_ref.dtype), w2_ref[...],
                preferred_element_type=jnp.float32)
    y = y + b2_ref[...].astype(jnp.float32)

    # LayerNorm over the *real* feature dim (biased variance, like torch).
    c_pad = y.shape[-1]
    inv_c = jnp.float32(1.0 / c_real)
    if c_pad == c_real:
        mu = jnp.sum(y, axis=-1, keepdims=True) * inv_c
        d = y - mu
        var = jnp.sum(d * d, axis=-1, keepdims=True) * inv_c
        y_hat = d * jax.lax.rsqrt(var + eps)
    else:
        # C was lane-padded to a multiple of 128 for unmasked stores; mask the
        # padded columns out of the statistics so semantics match LayerNorm(C).
        mask = jax.lax.broadcasted_iota(jnp.int32, (1, c_pad), 1) < c_real
        y_m = jnp.where(mask, y, 0.0)
        mu = jnp.sum(y_m, axis=-1, keepdims=True) * inv_c
        d = jnp.where(mask, y - mu, 0.0)
        var = jnp.sum(d * d, axis=-1, keepdims=True) * inv_c
        y_hat = (y - mu) * jax.lax.rsqrt(var + eps)

    out = (y_hat * g_ref[...].astype(jnp.float32)
           + beta_ref[...].astype(jnp.float32))
    o_ref[...] = out.astype(o_ref.dtype)


def mlp_proj_retrie_forward(id_embeds, params, *, tm=256, eps=1e-5,
                            compute_dtype=jnp.bfloat16):
    """Pallas implementation of MLPProjRetrieModel.forward.

    id_embeds: [B, N, E] float array.
    params: dict with w1 (E, 2E), b1 (2E,), w2 (2E, C), b2 (C,),
            ln_gamma (C,), ln_beta (C,).
    tm: row-tile size (sweep 256-1024 on v6e/v7x; >=128 on v5e).
    compute_dtype: matmul operand dtype (bf16 -> native MXU rate; f32 exact).
    Returns: [B, N, C].
    """
    B, N, E = id_embeds.shape
    w1, b1 = params["w1"], params["b1"]
    w2, b2 = params["w2"], params["b2"]
    gamma, beta = params["ln_gamma"], params["ln_beta"]
    H = w1.shape[1]
    C = w2.shape[1]
    out_dtype = id_embeds.dtype

    # --- lane-align the output feature dim (unmasked vst stores) -------------
    C_pad = _round_up(C, 128)
    if C_pad != C:
        pc = C_pad - C
        w2 = jnp.pad(w2, ((0, 0), (0, pc)))     # one-time, parameter-sized pads
        b2 = jnp.pad(b2, ((0, pc),))
        gamma = jnp.pad(gamma, ((0, pc),))
        beta = jnp.pad(beta, ((0, pc),))

    # --- operand dtypes -------------------------------------------------------
    # Weights/activations feed the MXU in compute_dtype (bf16 by default);
    # biases / LayerNorm affine stay f32 for the f32 epilogue.
    x2d = id_embeds.reshape(B * N, E).astype(compute_dtype)
    w1c = w1.astype(compute_dtype)
    w2c = w2.astype(compute_dtype)
    b1_2d = b1.astype(jnp.float32).reshape(1, H)
    b2_2d = b2.astype(jnp.float32).reshape(1, C_pad)
    g_2d = gamma.astype(jnp.float32).reshape(1, C_pad)
    beta_2d = beta.astype(jnp.float32).reshape(1, C_pad)

    # --- row tiling (no HBM row-padding copy: ragged tail blocks are masked) --
    M = B * N
    rows8 = _round_up(M, 8)                      # sublane granularity
    tm_eff = min(_round_up(tm, 8), rows8)
    if rows8 > 8 and _cdiv(M, tm_eff) < 2:
        # Keep >=2 grid steps so the row axis can still shard across v7x's 2 TCs.
        tm_eff = _round_up(_cdiv(rows8, 2), 8)
    grid = (_cdiv(M, tm_eff),)

    # --- VMEM budget (v5e's default scoped limit is only 16 MiB) --------------
    wsz = jnp.dtype(compute_dtype).itemsize
    weight_bytes = (E * H + H * C_pad) * wsz
    io_bytes = (2 * tm_eff * E * wsz
                + 2 * tm_eff * C_pad * jnp.dtype(out_dtype).itemsize)
    interm_bytes = tm_eff * (H + C_pad) * 4
    needed = 2 * weight_bytes + io_bytes + 2 * interm_bytes
    vmem_limit = int(min(64 * 1024 * 1024,
                         max(32 * 1024 * 1024, int(needed * 1.5))))

    kernel = functools.partial(_mlp_proj_ln_kernel, eps=eps, c_real=C)

    out = pl.pallas_call(
        kernel,
        out_shape=jax.ShapeDtypeStruct((M, C_pad), out_dtype),
        grid_spec=pltpu.PrefetchScalarGridSpec(
            num_scalar_prefetch=0,
            grid=grid,
            in_specs=[
                pl.BlockSpec((tm_eff, E), lambda i: (i, 0)),      # x rows
                pl.BlockSpec((E, H), lambda i: (0, 0)),           # w1 (invariant)
                pl.BlockSpec((1, H), lambda i: (0, 0)),           # b1
                pl.BlockSpec((H, C_pad), lambda i: (0, 0)),       # w2 (invariant)
                pl.BlockSpec((1, C_pad), lambda i: (0, 0)),       # b2
                pl.BlockSpec((1, C_pad), lambda i: (0, 0)),       # ln gamma
                pl.BlockSpec((1, C_pad), lambda i: (0, 0)),       # ln beta
            ],
            out_specs=pl.BlockSpec((tm_eff, C_pad), lambda i: (i, 0)),
        ),
        compiler_params=pltpu.CompilerParams(
            dimension_semantics=("parallel",),
            vmem_limit_bytes=vmem_limit),
    )(x2d, w1c, b1_2d, w2c, b2_2d, g_2d, beta_2d)

    if C_pad != C:
        out = out[:, :C]
    return out.reshape(B, N, C)


def init_params(key, embeddings_dim, cross_attention_dim):
    """Deterministic synthetic parameters (torch-Linear-like uniform init)."""
    H = embeddings_dim * 2
    k1, k2, k3, k4 = jax.random.split(key, 4)

    def lin_init(kw, kb, fan_in, shape_w, shape_b):
        bound = 1.0 / jnp.sqrt(jnp.float32(fan_in))
        w = jax.random.uniform(kw, shape_w, jnp.float32, -bound, bound)
        b = jax.random.uniform(kb, shape_b, jnp.float32, -bound, bound)
        return w, b

    w1, b1 = lin_init(k1, k2, embeddings_dim, (embeddings_dim, H), (H,))
    w2, b2 = lin_init(k3, k4, H, (H, cross_attention_dim), (cross_attention_dim,))
    return {
        "w1": w1, "b1": b1,
        "w2": w2, "b2": b2,
        "ln_gamma": jnp.ones((cross_attention_dim,), jnp.float32),
        "ln_beta": jnp.zeros((cross_attention_dim,), jnp.float32),
    }


def reference_forward(id_embeds, params, eps=1e-5, compute_dtype=jnp.float32):
    """Pure-JAX reference.

    compute_dtype=f32 matches the PyTorch module exactly; compute_dtype=bf16
    matches the kernel's bf16-matmul / f32-epilogue recipe.
    """
    x = id_embeds.astype(compute_dtype)
    w1 = params["w1"].astype(compute_dtype)
    w2 = params["w2"].astype(compute_dtype)
    h = jnp.dot(x, w1, preferred_element_type=jnp.float32) + params["b1"]
    h = 0.5 * h * (1.0 + jax.lax.erf(h * jnp.float32(_INV_SQRT2)))
    y = jnp.dot(h.astype(compute_dtype), w2,
                preferred_element_type=jnp.float32) + params["b2"]
    mu = jnp.mean(y, axis=-1, keepdims=True)
    var = jnp.mean(jnp.square(y - mu), axis=-1, keepdims=True)
    y_hat = (y - mu) * jax.lax.rsqrt(var + eps)
    return y_hat * params["ln_gamma"] + params["ln_beta"]


if __name__ == "__main__":
    # Small shapes consistent with the module (scaled-down dims).
    B, N = 2, 8                  # batch, number of retrieved id embeddings
    embeddings_dim = 32
    cross_attention_dim = 32

    key = jax.random.PRNGKey(0)
    kx, kp = jax.random.split(key)
    id_embeds = jax.random.normal(kx, (B, N, embeddings_dim), jnp.float32)
    params = init_params(kp, embeddings_dim, cross_attention_dim)

    # --- default (bf16 MXU operands, f32 epilogue) path ----------------------
    out = mlp_proj_retrie_forward(id_embeds, params)
    out = jax.block_until_ready(out)
    assert out.shape == (B, N, cross_attention_dim)

    # Check vs a reference using the same bf16-matmul / f32-epilogue recipe.
    ref_matched = reference_forward(id_embeds, params, compute_dtype=jnp.bfloat16)
    assert jnp.allclose(out, ref_matched, atol=1e-2, rtol=1e-2), \
        "mismatch vs numerics-matched (bf16) reference"

    # Loose sanity check vs the full-f32 PyTorch-semantics reference
    # (bound accounts for the bf16 matmul operands).
    ref_f32 = reference_forward(id_embeds, params, compute_dtype=jnp.float32)
    assert float(jnp.max(jnp.abs(out - ref_f32))) < 1e-1, "diverged from f32 reference"

    # --- exact f32 path: tight check against PyTorch-equivalent semantics ----
    out_f32 = mlp_proj_retrie_forward(id_embeds, params,
                                      compute_dtype=jnp.float32)
    out_f32 = jax.block_until_ready(out_f32)
    assert jnp.allclose(out_f32, ref_f32, atol=2e-5, rtol=2e-5), \
        "mismatch vs f32 reference in exact mode"

    print("KERNEL_OK")
</pallas_src>

<mosaic_0001>
module attributes {stable_mosaic.version = 11 : i64} {
  func.func @_mlp_proj_ln_kernel(%arg0: i32, %arg1: memref<8x32xbf16, #tpu.memory_space<vmem>>, %arg2: memref<32x64xbf16, #tpu.memory_space<vmem>>, %arg3: memref<1x64xf32, #tpu.memory_space<vmem>>, %arg4: memref<64x128xbf16, #tpu.memory_space<vmem>>, %arg5: memref<1x128xf32, #tpu.memory_space<vmem>>, %arg6: memref<1x128xf32, #tpu.memory_space<vmem>>, %arg7: memref<1x128xf32, #tpu.memory_space<vmem>>, %arg8: memref<8x128xf32, #tpu.memory_space<vmem>>) attributes {dimension_semantics = [#tpu.dimension_semantics<parallel>], iteration_bounds = array<i64: 2>, scalar_prefetch = 0 : i64, scratch_operands = 0 : i64, tpu.core_type = #tpu.core_type<tc>, window_params = [{transform_indices = @transform_0, window_bounds = array<i64: 8, 32>}, {pipeline_mode = #tpu.pipeline_mode<synchronous>, transform_indices = @transform_1, window_bounds = array<i64: 32, 64>}, {pipeline_mode = #tpu.pipeline_mode<synchronous>, transform_indices = @transform_2, window_bounds = array<i64: 1, 64>}, {pipeline_mode = #tpu.pipeline_mode<synchronous>, transform_indices = @transform_3, window_bounds = array<i64: 64, 128>}, {pipeline_mode = #tpu.pipeline_mode<synchronous>, transform_indices = @transform_4, window_bounds = array<i64: 1, 128>}, {pipeline_mode = #tpu.pipeline_mode<synchronous>, transform_indices = @transform_5, window_bounds = array<i64: 1, 128>}, {pipeline_mode = #tpu.pipeline_mode<synchronous>, transform_indices = @transform_6, window_bounds = array<i64: 1, 128>}, {transform_indices = @transform_7, window_bounds = array<i64: 8, 128>}]} {
    %c0 = arith.constant 0 : index
    %c0_0 = arith.constant 0 : index
    %0 = vector.load %arg1[%c0, %c0_0] : memref<8x32xbf16, #tpu.memory_space<vmem>>, vector<8x32xbf16>
    %c0_1 = arith.constant 0 : index
    %c0_2 = arith.constant 0 : index
    %1 = vector.load %arg2[%c0_1, %c0_2] : memref<32x64xbf16, #tpu.memory_space<vmem>>, vector<32x64xbf16>
    %cst = arith.constant dense<0.000000e+00> : vector<8x64xf32>
    %2 = tpu.matmul %0, %1, %cst {dimension_numbers = #tpu.dot_dimension_numbers<[1], [0], [0], [1], [0, 0, 1, 1], [], []>} : vector<8x32xbf16>, vector<32x64xbf16>, vector<8x64xf32> -> vector<8x64xf32>
    %c0_3 = arith.constant 0 : index
    %c0_4 = arith.constant 0 : index
    %3 = vector.load %arg3[%c0_3, %c0_4] : memref<1x64xf32, #tpu.memory_space<vmem>>, vector<1x64xf32>
    %4 = vector.broadcast %3 : vector<1x64xf32> to vector<8x64xf32>
    %5 = arith.addf %2, %4 : vector<8x64xf32>
    %cst_5 = arith.constant 5.000000e-01 : f32
    %6 = vector.broadcast %cst_5 : f32 to vector<8x64xf32>
    %7 = arith.mulf %6, %5 : vector<8x64xf32>
    %cst_6 = arith.constant 0.707106769 : f32
    %8 = vector.broadcast %cst_6 : f32 to vector<8x64xf32>
    %9 = arith.mulf %5, %8 : vector<8x64xf32>
    %10 = math.erf %9 : vector<8x64xf32>
    %cst_7 = arith.constant 1.000000e+00 : f32
    %11 = vector.broadcast %cst_7 : f32 to vector<8x64xf32>
    %12 = arith.addf %11, %10 : vector<8x64xf32>
    %13 = arith.mulf %7, %12 : vector<8x64xf32>
    %14 = arith.truncf %13 : vector<8x64xf32> to vector<8x64xbf16>
    %c0_8 = arith.constant 0 : index
    %c0_9 = arith.constant 0 : index
    %15 = vector.load %arg4[%c0_8, %c0_9] : memref<64x128xbf16, #tpu.memory_space<vmem>>, vector<64x128xbf16>
    %cst_10 = arith.constant dense<0.000000e+00> : vector<8x128xf32>
    %16 = tpu.matmul %14, %15, %cst_10 {dimension_numbers = #tpu.dot_dimension_numbers<[1], [0], [0], [1], [0, 0, 1, 1], [], []>} : vector<8x64xbf16>, vector<64x128xbf16>, vector<8x128xf32> -> vector<8x128xf32>
    %c0_11 = arith.constant 0 : index
    %c0_12 = arith.constant 0 : index
    %17 = vector.load %arg5[%c0_11, %c0_12] : memref<1x128xf32, #tpu.memory_space<vmem>>, vector<1x128xf32>
    %18 = vector.broadcast %17 : vector<1x128xf32> to vector<8x128xf32>
    %19 = arith.addf %16, %18 : vector<8x128xf32>
    %20 = tpu.iota {dimensions = array<i32: 1>} : vector<1x128xi32>
    %c32_i32 = arith.constant 32 : i32
    %21 = vector.broadcast %c32_i32 : i32 to vector<1x128xi32>
    %22 = arith.cmpi slt, %20, %21 : vector<1x128xi32>
    %cst_13 = arith.constant 0.000000e+00 : f32
    %23 = vector.shape_cast %22 : vector<1x128xi1> to vector<1x128xi1>
    %24 = vector.broadcast %23 : vector<1x128xi1> to vector<8x128xi1>
    %25 = vector.broadcast %cst_13 : f32 to vector<8x128xf32>
    %26 = arith.select %24, %19, %25 : vector<8x128xi1>, vector<8x128xf32>
    %cst_14 = arith.constant dense<0.000000e+00> : vector<8xf32>
    %27 = vector.multi_reduction <add>, %26, %cst_14 [1] : vector<8x128xf32> to vector<8xf32>
    %28 = vector.shape_cast %27 : vector<8xf32> to vector<8x1xf32>
    %cst_15 = arith.constant 3.125000e-02 : f32
    %29 = vector.broadcast %cst_15 : f32 to vector<8x1xf32>
    %30 = arith.mulf %28, %29 : vector<8x1xf32>
    %31 = vector.broadcast %30 : vector<8x1xf32> to vector<8x128xf32>
    %32 = arith.subf %19, %31 : vector<8x128xf32>
    %cst_16 = arith.constant 0.000000e+00 : f32
    %33 = vector.shape_cast %22 : vector<1x128xi1> to vector<1x128xi1>
    %34 = vector.broadcast %33 : vector<1x128xi1> to vector<8x128xi1>
    %35 = vector.broadcast %cst_16 : f32 to vector<8x128xf32>
    %36 = arith.select %34, %32, %35 : vector<8x128xi1>, vector<8x128xf32>
    %37 = arith.mulf %36, %36 : vector<8x128xf32>
    %cst_17 = arith.constant dense<0.000000e+00> : vector<8xf32>
    %38 = vector.multi_reduction <add>, %37, %cst_17 [1] : vector<8x128xf32> to vector<8xf32>
    %39 = vector.shape_cast %38 : vector<8xf32> to vector<8x1xf32>
    %cst_18 = arith.constant 3.125000e-02 : f32
    %40 = vector.broadcast %cst_18 : f32 to vector<8x1xf32>
    %41 = arith.mulf %39, %40 : vector<8x1xf32>
    %42 = vector.broadcast %30 : vector<8x1xf32> to vector<8x128xf32>
    %43 = arith.subf %19, %42 : vector<8x128xf32>
    %cst_19 = arith.constant 9.99999974E-6 : f32
    %44 = vector.broadcast %cst_19 : f32 to vector<8x1xf32>
    %45 = arith.addf %41, %44 : vector<8x1xf32>
    %46 = math.rsqrt %45 : vector<8x1xf32>
    %47 = vector.broadcast %46 : vector<8x1xf32> to vector<8x128xf32>
    %48 = arith.mulf %43, %47 : vector<8x128xf32>
    %c0_20 = arith.constant 0 : index
    %c0_21 = arith.constant 0 : index
    %49 = vector.load %arg6[%c0_20, %c0_21] : memref<1x128xf32, #tpu.memory_space<vmem>>, vector<1x128xf32>
    %50 = vector.broadcast %49 : vector<1x128xf32> to vector<8x128xf32>
    %51 = arith.mulf %48, %50 : vector<8x128xf32>
    %c0_22 = arith.constant 0 : index
    %c0_23 = arith.constant 0 : index
    %52 = vector.load %arg7[%c0_22, %c0_23] : memref<1x128xf32, #tpu.memory_space<vmem>>, vector<1x128xf32>
    %53 = vector.broadcast %52 : vector<1x128xf32> to vector<8x128xf32>
    %54 = arith.addf %51, %53 : vector<8x128xf32>
    %c0_24 = arith.constant 0 : index
    %c0_25 = arith.constant 0 : index
    %55 = vector.load %arg8[%c0_24, %c0_25] : memref<8x128xf32, #tpu.memory_space<vmem>>, vector<8x128xf32>
    tpu.vector_store %arg8[%c0_24, %c0_25], %54 {strides = array<i32>} : memref<8x128xf32, #tpu.memory_space<vmem>>, vector<8x128xf32>,
    return
  }
  func.func @transform_0(%arg0: i32) -> (i32, i32) {
    %c0_i32 = arith.constant 0 : i32
    %c0_i32_0 = arith.constant 0 : i32
    return %arg0, %c0_i32 : i32, i32
  }
  func.func @transform_1(%arg0: i32) -> (i32, i32) {
    %c0_i32 = arith.constant 0 : i32
    %c0_i32_0 = arith.constant 0 : i32
    %c0_i32_1 = arith.constant 0 : i32
    return %c0_i32, %c0_i32_0 : i32, i32
  }
  func.func @transform_2(%arg0: i32) -> (i32, i32) {
    %c0_i32 = arith.constant 0 : i32
    %c0_i32_0 = arith.constant 0 : i32
    %c0_i32_1 = arith.constant 0 : i32
    return %c0_i32, %c0_i32_0 : i32, i32
  }
  func.func @transform_3(%arg0: i32) -> (i32, i32) {
    %c0_i32 = arith.constant 0 : i32
    %c0_i32_0 = arith.constant 0 : i32
    %c0_i32_1 = arith.constant 0 : i32
    return %c0_i32, %c0_i32_0 : i32, i32
  }
  func.func @transform_4(%arg0: i32) -> (i32, i32) {
    %c0_i32 = arith.constant 0 : i32
    %c0_i32_0 = arith.constant 0 : i32
    %c0_i32_1 = arith.constant 0 : i32
    return %c0_i32, %c0_i32_0 : i32, i32
  }
  func.func @transform_5(%arg0: i32) -> (i32, i32) {
    %c0_i32 = arith.constant 0 : i32
    %c0_i32_0 = arith.constant 0 : i32
    %c0_i32_1 = arith.constant 0 : i32
    return %c0_i32, %c0_i32_0 : i32, i32
  }
  func.func @transform_6(%arg0: i32) -> (i32, i32) {
    %c0_i32 = arith.constant 0 : i32
    %c0_i32_0 = arith.constant 0 : i32
    %c0_i32_1 = arith.constant 0 : i32
    return %c0_i32, %c0_i32_0 : i32, i32
  }
  func.func @transform_7(%arg0: i32) -> (i32, i32) {
    %c0_i32 = arith.constant 0 : i32
    %c0_i32_0 = arith.constant 0 : i32
    return %arg0, %c0_i32 : i32, i32
  }
}

</mosaic_0001>

<llo_original>
// kernel: tpu_custom_call.1
$region0: #{tpu_custom_call.1}
  #allocation0 [shape = 'u32[]', space=smem, size = 0x4, offset = 0x4, fixed_abs, tag = 'smem constant byte address 0x4 - core index']
  #allocation1 [shape = 'u32[72,128]{1,0:T(1,128)}', space=vmem, size = 0x9000, scoped, tag = 'internal scratch']
  %s0 = inlined_call_operand.hbm [shape: bf16[16,32], index: 0, kind: input, shape index: {}]
  %s1 = inlined_call_operand.hbm [shape: bf16[32,64], index: 1, kind: input, shape index: {}]
  %s2 = inlined_call_operand.vmem [shape: f32[1,64], index: 2, kind: input, shape index: {}]
  %s3 = inlined_call_operand.hbm [shape: bf16[64,128], index: 3, kind: input, shape index: {}]
  %s4 = inlined_call_operand.vmem [shape: f32[1,128], index: 4, kind: input, shape index: {}]
  %s5 = inlined_call_operand.vmem [shape: f32[1,128], index: 5, kind: input, shape index: {}]
  %s6 = inlined_call_operand.vmem [shape: f32[1,128], index: 6, kind: input, shape index: {}]
  %s7 = inlined_call_operand.hbm [shape: f32[16,128], index: 7, kind: output, shape index: {}]
  %s8 = sld [smem:[#allocation0]]
  $region73: #{tpu_custom_call.1} parent=0
    _
  %s10 = ssub.s32 1, %s8
  %s11 = scalar_select 0, %s10, %s8
  $region1: #{tpu_custom_call.1} parent=0
    #allocation2 [shape = 'u8[4096]{0}', space=vmem, size = 0x1000, scoped, tag = 'input window, operand 0']
    #allocation3 [shape = 's32[2]{0}', space=sflag, size = 0x8, scoped, tag = 'scoped memory for tpu_custom_call.1']
    #allocation4 [shape = 's32[2]{0}', space=sflag, size = 0x8, scoped, tag = 'scoped memory for tpu_custom_call.1']
    #allocation5 [shape = 'u8[8192]{0}', space=vmem, size = 0x2000, scoped, tag = 'input window, operand 1, single buffered']
    #allocation6 [shape = 's32[1]{0}', space=sflag, size = 0x4, scoped, tag = 'scoped memory for tpu_custom_call.1']
    #allocation7 [shape = 'u8[16384]{0}', space=vmem, size = 0x4000, scoped, tag = 'input window, operand 3, single buffered']
    #allocation8 [shape = 'u8[8192]{0}', space=vmem, size = 0x2000, scoped, tag = 'output window, operand 0']
    %12 = vsyncpa [#allocation3], 0
    %s13 = scalar_lea.sflag [#allocation3], 1
    %14 = vsyncpa %s13, 0
    %15 = vsyncpa [#allocation6], 0
    %16 = vsyncpa [#allocation4], 0
    %s17 = scalar_lea.sflag [#allocation4], 1
    %18 = vsyncpa %s17, 0
    loop: start=0, step=1, limit=4
    $region2: #{tpu_custom_call.1} parent=1 // loop_pre_header
      _
    $region3: #{tpu_custom_call.1} parent=1 // loop_header
      %s20 = sphi 0, %s24
      %p21 = scmp.ge.s32.totalorder %s20, 4
      %s30 = sphi 0, %s32
      %s33 = sphi 0, %s30
      %s34 = sphi 0, %s33
      %s50 = sphi 0, %s34
      %s54 = sphi 0, %s54
      %s56 = sphi 0, %s54
      %s57 = sphi 0, %s56
      %s71 = sphi 0, %s57
      %s75 = sphi 0, %s75
      %s77 = sphi 0, %s75
      %s78 = sphi 0, %s77
      %s92 = sphi 0, %s78
      %s96 = sphi 0, %s96
      %s98 = sphi 0, %s96
      %s99 = sphi 0, %s98
      %s113 = sphi 0, %s99
      %s117 = sphi 0, %s117
      %s119 = sphi 0, %s117
      %s120 = sphi 0, %s119
      %s134 = sphi 0, %s120
      %s138 = sphi 0, %s138
      %s140 = sphi 0, %s138
      %s141 = sphi 0, %s140
      %s155 = sphi 0, %s141
      %s159 = sphi 0, %s159
      %s161 = sphi 0, %s159
      %s162 = sphi 0, %s161
      %s176 = sphi 0, %s162
      %s182 = sphi 0, %s184
      %s185 = sphi 0, %s182
      %s186 = sphi 0, %s185
      %s202 = sphi 0, %s186
    $region4: #{tpu_custom_call.1} parent=1 // loop_header_branch
      %23 = sbr.rel (%p21) target = $region8
    $region5: #{tpu_custom_call.1} parent=1 // loop_body
      %s25 = ssub.s32 %s20, 1
      %s26 = ssub.s32 %s20, 2
      %s27 = sadd.s32 %s20, 1
      %s28 = ssub.s32 %s20, %s27
      %p29 = scmp.eq.s32.totalorder %s28, 0
      %s31 = sadd.s32 %s30, 1
      %s32 = scalar_select %p29, %s30, %s31
      %p35 = pneg %p29
      %p36 = scmp.eq.s32.totalorder %s20, 1
      %p37 = por %p35, %p36
      %p38 = scmp.ne.s32.totalorder %s30, %s33
      %p39 = scmp.eq.s32.totalorder %s20, 0
      %p40 = por %p38, %p39
      %p41 = scmp.ne.s32.totalorder %s30, %s33
      %p42 = scmp.eq.s32.totalorder %s25, 1
      %p43 = por %p41, %p42
      %p44 = scmp.ne.s32.totalorder %s33, %s34
      %p45 = scmp.eq.s32.totalorder %s25, 0
      %p46 = por %p44, %p45
      %p47 = scmp.ne.s32.totalorder %s33, %s34
      %p48 = scmp.eq.s32.totalorder %s26, 1
      %p49 = por %p47, %p48
      %p51 = scmp.ne.s32.totalorder %s34, %s50
      %p52 = scmp.eq.s32.totalorder %s26, 0
      %p53 = por %p51, %p52
      %s55 = sadd.s32 %s54, 1
      %p58 = scmp.eq.s32.totalorder %s20, 1
      %p59 = scmp.ne.s32.totalorder %s54, %s56
      %p60 = scmp.eq.s32.totalorder %s20, 0
      %p61 = por %p59, %p60
      %p62 = scmp.ne.s32.totalorder %s54, %s56
      %p63 = scmp.eq.s32.totalorder %s25, 1
      %p64 = por %p62, %p63
      %p65 = scmp.ne.s32.totalorder %s56, %s57
      %p66 = scmp.eq.s32.totalorder %s25, 0
      %p67 = por %p65, %p66
      %p68 = scmp.ne.s32.totalorder %s56, %s57
      %p69 = scmp.eq.s32.totalorder %s26, 1
      %p70 = por %p68, %p69
      %p72 = scmp.ne.s32.totalorder %s57, %s71
      %p73 = scmp.eq.s32.totalorder %s26, 0
      %p74 = por %p72, %p73
      %s76 = sadd.s32 %s75, 1
      %p79 = scmp.eq.s32.totalorder %s20, 1
      %p80 = scmp.ne.s32.totalorder %s75, %s77
      %p81 = scmp.eq.s32.totalorder %s20, 0
      %p82 = por %p80, %p81
      %p83 = scmp.ne.s32.totalorder %s75, %s77
      %p84 = scmp.eq.s32.totalorder %s25, 1
      %p85 = por %p83, %p84
      %p86 = scmp.ne.s32.totalorder %s77, %s78
      %p87 = scmp.eq.s32.totalorder %s25, 0
      %p88 = por %p86, %p87
      %p89 = scmp.ne.s32.totalorder %s77, %s78
      %p90 = scmp.eq.s32.totalorder %s26, 1
      %p91 = por %p89, %p90
      %p93 = scmp.ne.s32.totalorder %s78, %s92
      %p94 = scmp.eq.s32.totalorder %s26, 0
      %p95 = por %p93, %p94
      %s97 = sadd.s32 %s96, 1
      %p100 = scmp.eq.s32.totalorder %s20, 1
      %p101 = scmp.ne.s32.totalorder %s96, %s98
      %p102 = scmp.eq.s32.totalorder %s20, 0
      %p103 = por %p101, %p102
      %p104 = scmp.ne.s32.totalorder %s96, %s98
      %p105 = scmp.eq.s32.totalorder %s25, 1
      %p106 = por %p104, %p105
      %p107 = scmp.ne.s32.totalorder %s98, %s99
      %p108 = scmp.eq.s32.totalorder %s25, 0
      %p109 = por %p107, %p108
      %p110 = scmp.ne.s32.totalorder %s98, %s99
      %p111 = scmp.eq.s32.totalorder %s26, 1
      %p112 = por %p110, %p111
      %p114 = scmp.ne.s32.totalorder %s99, %s113
      %p115 = scmp.eq.s32.totalorder %s26, 0
      %p116 = por %p114, %p115
      %s118 = sadd.s32 %s117, 1
      %p121 = scmp.eq.s32.totalorder %s20, 1
      %p122 = scmp.ne.s32.totalorder %s117, %s119
      %p123 = scmp.eq.s32.totalorder %s20, 0
      %p124 = por %p122, %p123
      %p125 = scmp.ne.s32.totalorder %s117, %s119
      %p126 = scmp.eq.s32.totalorder %s25, 1
      %p127 = por %p125, %p126
      %p128 = scmp.ne.s32.totalorder %s119, %s120
      %p129 = scmp.eq.s32.totalorder %s25, 0
      %p130 = por %p128, %p129
      %p131 = scmp.ne.s32.totalorder %s119, %s120
      %p132 = scmp.eq.s32.totalorder %s26, 1
      %p133 = por %p131, %p132
      %p135 = scmp.ne.s32.totalorder %s120, %s134
      %p136 = scmp.eq.s32.totalorder %s26, 0
      %p137 = por %p135, %p136
      %s139 = sadd.s32 %s138, 1
      %p142 = scmp.eq.s32.totalorder %s20, 1
      %p143 = scmp.ne.s32.totalorder %s138, %s140
      %p144 = scmp.eq.s32.totalorder %s20, 0
      %p145 = por %p143, %p144
      %p146 = scmp.ne.s32.totalorder %s138, %s140
      %p147 = scmp.eq.s32.totalorder %s25, 1
      %p148 = por %p146, %p147
      %p149 = scmp.ne.s32.totalorder %s140, %s141
      %p150 = scmp.eq.s32.totalorder %s25, 0
      %p151 = por %p149, %p150
      %p152 = scmp.ne.s32.totalorder %s140, %s141
      %p153 = scmp.eq.s32.totalorder %s26, 1
      %p154 = por %p152, %p153
      %p156 = scmp.ne.s32.totalorder %s141, %s155
      %p157 = scmp.eq.s32.totalorder %s26, 0
      %p158 = por %p156, %p157
      %s160 = sadd.s32 %s159, 1
      %p163 = scmp.eq.s32.totalorder %s20, 1
      %p164 = scmp.ne.s32.totalorder %s159, %s161
      %p165 = scmp.eq.s32.totalorder %s20, 0
      %p166 = por %p164, %p165
      %p167 = scmp.ne.s32.totalorder %s159, %s161
      %p168 = scmp.eq.s32.totalorder %s25, 1
      %p169 = por %p167, %p168
      %p170 = scmp.ne.s32.totalorder %s161, %s162
      %p171 = scmp.eq.s32.totalorder %s25, 0
      %p172 = por %p170, %p171
      %p173 = scmp.ne.s32.totalorder %s161, %s162
      %p174 = scmp.eq.s32.totalorder %s26, 1
      %p175 = por %p173, %p174
      %p177 = scmp.ne.s32.totalorder %s162, %s176
      %p178 = scmp.eq.s32.totalorder %s26, 0
      %p179 = por %p177, %p178
      %s180 = ssub.s32 %s20, %s27
      %p181 = scmp.eq.s32.totalorder %s180, 0
      %s183 = sadd.s32 %s182, 1
      %s184 = scalar_select %p181, %s182, %s183
      %p187 = pneg %p181
      %p188 = scmp.eq.s32.totalorder %s20, 1
      %p189 = por %p187, %p188
      %p190 = scmp.ne.s32.totalorder %s182, %s185
      %p191 = scmp.eq.s32.totalorder %s20, 0
      %p192 = por %p190, %p191
      %p193 = scmp.ne.s32.totalorder %s182, %s185
      %p194 = scmp.eq.s32.totalorder %s25, 1
      %p195 = por %p193, %p194
      %p196 = scmp.ne.s32.totalorder %s185, %s186
      %p197 = scmp.eq.s32.totalorder %s25, 0
      %p198 = por %p196, %p197
      %p199 = scmp.ne.s32.totalorder %s185, %s186
      %p200 = scmp.eq.s32.totalorder %s26, 1
      %p201 = por %p199, %p200
      %p203 = scmp.ne.s32.totalorder %s186, %s202
      %p204 = scmp.eq.s32.totalorder %s26, 0
      %p205 = por %p203, %p204
      %p206 = scmp.le.s32.totalorder 1, %s20
      %p207 = scmp.lt.s32.totalorder %s20, 3
      %p208 = pnand %p206, %p207
      %p209 = pneg %p208
      // Predicated region
      $region9: #{tpu_custom_call.1} parent=5 // pred_check
        _
      $region10: #{tpu_custom_call.1} parent=5 // pred_check_branch
        %211 = sbr.rel (%p208) target = $region12
      $region11: #{tpu_custom_call.1} parent=5 // pred_region
        %s212 = ssub.s32 %s20, 1
        // Predicated region
        $region13: #{tpu_custom_call.1} parent=11 // pred_check
          %p213 = pneg %p67
        $region14: #{tpu_custom_call.1} parent=11 // pred_check_branch
          %215 = sbr.rel (%p213) target = $region16
        $region15: #{tpu_custom_call.1} parent=11 // pred_region
          %217 = vsyncadd [#allocation6], 0
          %s218 = sshll.u32 %s1, 4
          %s219 = int_to_ptr.hbm [resolvable:$true] %s218
          %s220 = sshll.u32 [#allocation5], 4
          %s221 = int_to_ptr.vmem [resolvable:$true] %s220
          %226 = dma.hbm_to_vmem [thread:$0]  %s219, 256, %s221, [#allocation6], 64, 64, 4
        $region16: #{tpu_custom_call.1} parent=11 // pred_fallthru
          _
        // Predicated region
        $region17: #{tpu_custom_call.1} parent=11 // pred_check
          %p227 = pneg %p88
        $region18: #{tpu_custom_call.1} parent=11 // pred_check_branch
          %229 = sbr.rel (%p227) target = $region20
        $region19: #{tpu_custom_call.1} parent=11 // pred_region
          _
        $region20: #{tpu_custom_call.1} parent=11 // pred_fallthru
          _
        // Predicated region
        $region21: #{tpu_custom_call.1} parent=11 // pred_check
          %p230 = pneg %p109
        $region22: #{tpu_custom_call.1} parent=11 // pred_check_branch
          %232 = sbr.rel (%p230) target = $region24
        $region23: #{tpu_custom_call.1} parent=11 // pred_region
          %234 = vsyncadd [#allocation6], 0
          %s235 = sshll.u32 %s3, 4
          %s236 = int_to_ptr.hbm [resolvable:$true] %s235
          %s237 = sshll.u32 [#allocation7], 4
          %s238 = int_to_ptr.vmem [resolvable:$true] %s237
          %243 = dma.hbm_to_vmem [thread:$0]  %s236, 512, %s238, [#allocation6], 64, 64, 4
        $region24: #{tpu_custom_call.1} parent=11 // pred_fallthru
          _
        // Predicated region
        $region25: #{tpu_custom_call.1} parent=11 // pred_check
          %p244 = pneg %p130
        $region26: #{tpu_custom_call.1} parent=11 // pred_check_branch
          %246 = sbr.rel (%p244) target = $region28
        $region27: #{tpu_custom_call.1} parent=11 // pred_region
          _
        $region28: #{tpu_custom_call.1} parent=11 // pred_fallthru
          _
        // Predicated region
        $region29: #{tpu_custom_call.1} parent=11 // pred_check
          %p247 = pneg %p151
        $region30: #{tpu_custom_call.1} parent=11 // pred_check_branch
          %249 = sbr.rel (%p247) target = $region32
        $region31: #{tpu_custom_call.1} parent=11 // pred_region
          _
        $region32: #{tpu_custom_call.1} parent=11 // pred_fallthru
          _
        // Predicated region
        $region33: #{tpu_custom_call.1} parent=11 // pred_check
          %p250 = pneg %p172
        $region34: #{tpu_custom_call.1} parent=11 // pred_check_branch
          %252 = sbr.rel (%p250) target = $region36
        $region35: #{tpu_custom_call.1} parent=11 // pred_region
          _
        $region36: #{tpu_custom_call.1} parent=11 // pred_fallthru
          _
      $region12: #{tpu_custom_call.1} parent=5 // pred_fallthru
        _
      %p253 = scmp.lt.s32.totalorder %s20, 2
      // Predicated region
      $region37: #{tpu_custom_call.1} parent=5 // pred_check
        %p254 = pneg %p253
      $region38: #{tpu_custom_call.1} parent=5 // pred_check_branch
        %256 = sbr.rel (%p254) target = $region40
      $region39: #{tpu_custom_call.1} parent=5 // pred_region
        // Predicated region
        $region41: #{tpu_custom_call.1} parent=39 // pred_check
          %p257 = pneg %p40
        $region42: #{tpu_custom_call.1} parent=39 // pred_check_branch
          %259 = sbr.rel (%p257) target = $region44
        $region43: #{tpu_custom_call.1} parent=39 // pred_region
          %s260 = sand.u32 %s30, 1
          %s261 = scalar_lea.sflag [#allocation3], %s260
          %s262 = sand.u32 %s30, 1
          %s263 = smul.addr %s262, 4
          %s264 = scalar_lea.vmem [#allocation2], %s263
          %266 = vsyncadd %s261, 0
          %s267 = smul.addr %s20, 4
          %s268 = scalar_lea.hbm %s0, %s267
          %s270 = sshll.u32 %s268, 4
          %s271 = int_to_ptr.hbm [resolvable:$true] %s270
          %s272 = sshll.u32 %s264, 4
          %s273 = int_to_ptr.vmem [resolvable:$true] %s272
          %275 = dma.hbm_to_vmem [thread:$0]  %s271, 64, %s273, %s261
        $region44: #{tpu_custom_call.1} parent=39 // pred_fallthru
          _
      $region40: #{tpu_custom_call.1} parent=5 // pred_fallthru
        _
      %p276 = scmp.le.s32.totalorder 1, %s20
      %p277 = scmp.lt.s32.totalorder %s20, 3
      %p278 = pnand %p276, %p277
      %p279 = pneg %p278
      // Predicated region
      $region45: #{tpu_custom_call.1} parent=5 // pred_check
        _
      $region46: #{tpu_custom_call.1} parent=5 // pred_check_branch
        %281 = sbr.rel (%p278) target = $region48
      $region47: #{tpu_custom_call.1} parent=5 // pred_region
        %s282 = ssub.s32 %s20, 1
        %s283 = sand.u32 %s33, 1
        %s284 = scalar_lea.sflag [#allocation3], %s283
        %s285 = sand.u32 %s33, 1
        %s286 = smul.addr %s285, 4
        %s287 = scalar_lea.vmem [#allocation2], %s286
        // Predicated region
        $region49: #{tpu_custom_call.1} parent=47 // pred_check
          %p288 = pneg %p46
        $region50: #{tpu_custom_call.1} parent=47 // pred_check_branch
          %290 = sbr.rel (%p288) target = $region52
        $region51: #{tpu_custom_call.1} parent=47 // pred_region
          %292 = dma.done %s284, 64
        $region52: #{tpu_custom_call.1} parent=47 // pred_fallthru
          _
        // Predicated region
        $region53: #{tpu_custom_call.1} parent=47 // pred_check
          %p293 = pneg %p67
        $region54: #{tpu_custom_call.1} parent=47 // pred_check_branch
          %295 = sbr.rel (%p293) target = $region56
        $region55: #{tpu_custom_call.1} parent=47 // pred_region
          %297 = dma.done [#allocation6], 256
        $region56: #{tpu_custom_call.1} parent=47 // pred_fallthru
          _
        // Predicated region
        $region57: #{tpu_custom_call.1} parent=47 // pred_check
          %p298 = pneg %p109
        $region58: #{tpu_custom_call.1} parent=47 // pred_check_branch
          %300 = sbr.rel (%p298) target = $region60
        $region59: #{tpu_custom_call.1} parent=47 // pred_region
          %302 = dma.done [#allocation6], 512
        $region60: #{tpu_custom_call.1} parent=47 // pred_fallthru
          _
        %s303 = sand.u32 %s33, 1
        %s304 = scalar_lea.sflag [#allocation3], %s303
        %s305 = sand.u32 %s33, 1
        %s306 = smul.addr %s305, 4
        %s307 = scalar_lea.vmem [#allocation2], %s306
        %p308 = pneg %p46
        %p309 = pneg %p43
        %p310 = pneg %p67
        %p311 = pneg %p64
        %p312 = pneg %p88
        %p313 = pneg %p85
        %p314 = pneg %p109
        %p315 = pneg %p106
        %p316 = pneg %p130
        %p317 = pneg %p127
        %p318 = pneg %p151
        %p319 = pneg %p148
        %p320 = pneg %p172
        %p321 = pneg %p169
        %p322 = pneg %p198
        %p323 = pneg %p195
        %s324 = sand.u32 %s185, 1
        %s325 = scalar_lea.sflag [#allocation4], %s324
        %s326 = sand.u32 %s185, 1
        %s327 = smul.addr %s326, 8
        %s328 = scalar_lea.vmem [#allocation8], %s327
        %v330 = vld [vmem:[%s287] sm:$0xf]
        %v331 = vld [vmem:[#allocation5] sm:$0xf]
        %v332 = vld [vmem:[#allocation5 + $0x4] sm:$0xf]
        %v333 = vld [vmem:[#allocation5 + $0x8] sm:$0xf]
        %v334 = vld [vmem:[#allocation5 + $0xc] sm:$0xf]
        %v335 = vld [vmem:[%s2] sm:$0x1]
        %v337 = vperm.slane %v335, 0
        %v343 = vunpack.c.l.b16 %v331
        %v344 = vunpack.c.l.b16 %v332
        %v345 = vunpack.c.l.b16 %v333
        %v346 = vunpack.c.l.b16 %v334
        %v347 = vpack.c.b16 %v344, %v343
        %v348 = vpack.c.b16 %v346, %v345
        %vm351 = vcmask 261120
        %v353 = vsel %vm351, %v330, 0
        %355 = vmatpush.bf16.msra.mxu0 0
        %356 = vmatpush.bf16.msra.mxu0 0
        %357 = vmatpush.bf16.msra.mxu0 0
        %358 = vmatpush.bf16.msra.mxu0 0
        %359 = vmatpush.bf16.msra.mxu0 0
        %360 = vmatpush.bf16.msra.mxu0 0
        %361 = vmatpush.bf16.msra.mxu0 %v348
        %362 = vmatpush.bf16.msra.mxu0 %v347
        %363 = vmatmul.bf16.gmra.mxu0 %v353
        %v364 = vpop.f32.mrf.mxu0
        %v365 = vadd.f32 %v337, %v364
        %v366 = vpop.f32.mrf.mxu0
        %367 = vdwg.mxu0
        %v368 = vmul.f32 %v365, 0.5
        %v369 = vmul.f32 %v365, 0.70710677
        %v370 = vmul.f32 %v369, %v369
        %v371 = vmin.f32 16.0, %v370
        %v372 = vmul.f32 %v371, 2.1237322e-06
        %v373 = vadd.f32 %v372, 0.00028619796
        %v374 = vmul.f32 %v371, %v373
        %v375 = vadd.f32 %v374, 0.0036580483
        %v376 = vmul.f32 %v371, %v375
        %v377 = vadd.f32 %v376, 0.05243302
        %v378 = vmul.f32 %v371, %v377
        %v379 = vadd.f32 %v378, 0.18741608
        %v380 = vmul.f32 %v371, %v379
        %v381 = vadd.f32 %v380, 1.1283791
        %v382 = vmul.f32 %v369, %v381
        %v383 = vmul.f32 %v371, 3.8918573e-05
        %v384 = vadd.f32 %v383, 0.001143296
        %v385 = vmul.f32 %v371, %v384
        %v386 = vadd.f32 %v385, 0.014752088
        %v387 = vmul.f32 %v371, %v386
        %v388 = vadd.f32 %v387, 0.112945676
        %v389 = vmul.f32 %v371, %v388
        %v390 = vadd.f32 %v389, 0.4994258
        %v391 = vmul.f32 %v371, %v390
        %v392 = vadd.f32 %v391, 1.0
        %v393 = vrcp.pop %v392
        %v394 = vmul.f32 %v392, %v393
        %v395 = vsub.f32 1.0, %v394
        %v396 = vmul.f32 %v393, %v395
        %v397 = vadd.f32 %v393, %v396
        %vm398 = vweird.f32 %v392
        %vm399 = vweird.f32 %v393
        %vm400 = vmor %vm398, %vm399
        %v401 = vsel %vm400, %v393, %v397
        %v402 = vand.u32 2147483647, %v392
        %vm403 = vcmp.eq.f32.partialorder %v402, 8.507059e+37
        %v404 = vand.u32 %v392, 2147483648
        %v405 = vor.u32 1.1754944e-38, %v404
        %v406 = vsel %vm403, %v405, %v401
        %v407 = vmul.f32 %v382, %v406
        %v408 = vmin.f32 %v407, 1.0
        %v409 = vmax.f32 %v408, -1.0
        %v410 = vadd.f32 %v409, 1.0
        %v411 = vmul.f32 %v368, %v410
        %v412 = vpack.c.bf16 %v411, %v411
        %v413 = vld [vmem:[#allocation7] sm:$0xf]
        %v414 = vld [vmem:[#allocation7 + $0x4] sm:$0xf]
        %v415 = vld [vmem:[#allocation7 + $0x8] sm:$0xf]
        %v416 = vld [vmem:[#allocation7 + $0xc] sm:$0xf]
        %v417 = vld [vmem:[#allocation7 + $0x10] sm:$0xf]
        %v418 = vld [vmem:[#allocation7 + $0x14] sm:$0xf]
        %v419 = vld [vmem:[#allocation7 + $0x18] sm:$0xf]
        %v420 = vld [vmem:[#allocation7 + $0x1c] sm:$0xf]
        %v421 = vld [vmem:[%s4] sm:$0x1]
        %v423 = vperm.slane %v421, 0
        %v433 = vunpack.c.l.b16 %v413
        %v434 = vunpack.c.l.b16 %v414
        %v435 = vunpack.c.l.b16 %v415
        %v436 = vunpack.c.l.b16 %v416
        %v437 = vunpack.c.l.b16 %v417
        %v438 = vunpack.c.l.b16 %v418
        %v439 = vunpack.c.l.b16 %v419
        %v440 = vunpack.c.l.b16 %v420
        %v441 = vpack.c.b16 %v434, %v433
        %v442 = vpack.c.b16 %v436, %v435
        %v443 = vpack.c.b16 %v438, %v437
        %v444 = vpack.c.b16 %v440, %v439
        %vm449 = vcmask 523264
        %v451 = vsel %vm449, %v412, 0
        %453 = vmatpush.bf16.msra.mxu0 0
        %454 = vmatpush.bf16.msra.mxu0 0
        %455 = vmatpush.bf16.msra.mxu0 0
        %456 = vmatpush.bf16.msra.mxu0 0
        %457 = vmatpush.bf16.msra.mxu0 %v444
        %458 = vmatpush.bf16.msra.mxu0 %v443
        %459 = vmatpush.bf16.msra.mxu0 %v442
        %460 = vmatpush.bf16.msra.mxu0 %v441
        %461 = vmatmul.bf16.gmra.mxu0 %v451
        %v462 = vpop.f32.mrf.mxu0
        %v463 = vadd.f32 %v423, %v462
        %v464 = vpop.f32.mrf.mxu0
        %465 = vdwg.mxu0
        %v466 = vlaneseq
        %v467 = vand.u32 %v466, 127
        %vm468 = vcmp.lt.s32.totalorder %v467, 32
        %v469 = vsel %vm468, 1, 0
        %vm470 = vcmp.eq.s32.totalorder %v469, 1
        %v471 = vsel %vm470, %v463, 0.0
        %472 = vadd.xlane.f32.xlu0 %v471
        %v473 = vpop.xlane.xlu0 %472
        %v474 = vmul.f32 %v473, 0.03125
        %v475 = vsub.f32 %v463, %v474
        %v476 = vsel %vm470, %v475, 0.0
        %v477 = vmul.f32 %v476, %v476
        %478 = vadd.xlane.f32.xlu0 %v477
        %v479 = vpop.xlane.xlu0 %478
        %v480 = vmul.f32 %v479, 0.03125
        %v481 = vadd.f32 %v480, 1e-05
        %v482 = vrsqrt.pop %v481
        %v483 = vmul.f32 %v482, %v481
        %v484 = vmul.f32 %v483, %v482
        %v485 = vmul.f32 0.5, %v484
        %v486 = vsub.f32 1.5, %v485
        %v487 = vmul.f32 %v482, %v486
        %vm488 = vweird.f32 %v481
        %vm489 = vweird.f32 %v482
        %vm490 = vmor %vm488, %vm489
        %v491 = vsel %vm490, %v482, %v487
        %v492 = vmul.f32 %v475, %v491
        %v493 = vld [vmem:[%s5] sm:$0x1]
        %v495 = vperm.slane %v493, 0
        %v497 = vmul.f32 %v492, %v495
        %v498 = vld [vmem:[%s6] sm:$0x1]
        %v500 = vperm.slane %v498, 0
        %v502 = vadd.f32 %v497, %v500
        %503 = vst [vmem:[%s328] sm:$0xff] %v502
        %s504 = sand.u32 %s185, 1
        %s505 = scalar_lea.sflag [#allocation4], %s504
        %s506 = sand.u32 %s185, 1
        %s507 = smul.addr %s506, 8
        %s508 = scalar_lea.vmem [#allocation8], %s507
        // Predicated region
        $region61: #{tpu_custom_call.1} parent=47 // pred_check
          %p509 = pneg %p195
        $region62: #{tpu_custom_call.1} parent=47 // pred_check_branch
          %511 = sbr.rel (%p509) target = $region64
        $region63: #{tpu_custom_call.1} parent=47 // pred_region
          %513 = vsyncadd %s505, 0
          %s514 = smul.addr %s25, 8
          %s515 = scalar_lea.hbm %s7, %s514
          %s517 = sshll.u32 %s508, 4
          %s518 = int_to_ptr.vmem [resolvable:$true] %s517
          %s519 = sshll.u32 %s515, 4
          %s520 = int_to_ptr.hbm [resolvable:$true] %s519
          %522 = dma.vmem_to_hbm [thread:$0]  %s518, 128, %s520, %s505
        $region64: #{tpu_custom_call.1} parent=47 // pred_fallthru
          _
      $region48: #{tpu_custom_call.1} parent=5 // pred_fallthru
        _
      %p523 = scmp.le.s32.totalorder 2, %s20
      // Predicated region
      $region65: #{tpu_custom_call.1} parent=5 // pred_check
        %p524 = pneg %p523
      $region66: #{tpu_custom_call.1} parent=5 // pred_check_branch
        %526 = sbr.rel (%p524) target = $region68
      $region67: #{tpu_custom_call.1} parent=5 // pred_region
        %s527 = ssub.s32 %s20, 2
        // Predicated region
        $region69: #{tpu_custom_call.1} parent=67 // pred_check
          %p528 = pneg %p201
        $region70: #{tpu_custom_call.1} parent=67 // pred_check_branch
          %530 = sbr.rel (%p528) target = $region72
        $region71: #{tpu_custom_call.1} parent=67 // pred_region
          %s531 = sand.u32 %s186, 1
          %s532 = scalar_lea.sflag [#allocation4], %s531
          %s533 = sand.u32 %s186, 1
          %s534 = smul.addr %s533, 8
          %s535 = scalar_lea.vmem [#allocation8], %s534
          %537 = dma.done %s532, 128
        $region72: #{tpu_custom_call.1} parent=67 // pred_fallthru
          _
      $region68: #{tpu_custom_call.1} parent=5 // pred_fallthru
        _
    $region6: #{tpu_custom_call.1} parent=1 // loop_footer
      %s24 = sadd.s32 1, %s20
    $region7: #{tpu_custom_call.1} parent=1 // loop_footer_branch
      %19 = sbr.rel target = $region3
    $region8: #{tpu_custom_call.1} parent=1 // loop_exit
      _
    %538 = vsyncpa [#allocation3], 1
    %s539 = scalar_lea.sflag [#allocation3], 1
    %540 = vsyncpa %s539, 1
    %541 = vsyncpa [#allocation6], 1
    %542 = vsyncpa [#allocation4], 1
    %s543 = scalar_lea.sflag [#allocation4], 1
    %544 = vsyncpa %s543, 1

</llo_original>
